<compile_context>
chip_gen: v7x
topology: tpu7x:2x2x1
jax: 0.10.0
libtpu: 0.0.40
codegen_flags: <defaults>
</compile_context>

<pallas_src>
import jax
import jax.numpy as jnp
from jax.experimental import pallas as pl
from jax.experimental.pallas import tpu as pltpu


def _round_up(n, m):
    return ((n + m - 1) // m) * m


# --------------------------------------------------------------------------- #
# Kernel
# --------------------------------------------------------------------------- #
def _mlp_head_kernel(x_ref, w1_ref, b1_ref, w2_ref, b2_ref, o_ref):
    """Fused: out[t] = GELU(x[t] @ W1 + b1) . w2_row + b2  for one batch tile.

    x_ref:  (TB, F_pad) f32     (cast to bf16 on the VPU, free under MXU slack)
    w1_ref: (F_pad, H_pad) bf16 (grid-invariant, single-buffered)
    b1_ref: (1, H_pad) f32      w2_ref: (1, H_pad) f32 (row form of (H,1) weight)
    b2_ref: (1,) f32 in SMEM    o_ref:  (1, TB, 1) f32 column tile
    """
    # MXU: bf16 operands, f32 accumulation.
    x_bf = x_ref[...].astype(jnp.bfloat16)
    h = jnp.dot(x_bf, w1_ref[...], preferred_element_type=jnp.float32) + b1_ref[...]
    # VPU/EUP: elementwise math stays f32 (v5e has no bf16 VPU/EUP); tanh GELU -> EUP.
    h = jax.nn.gelu(h, approximate=True)
    # H -> 1 head as VPU multiply + lane reduction: avoids an N=1 MXU pass.
    s = jnp.sum(h * w2_ref[...], axis=-1, keepdims=True) + b2_ref[0]   # (TB, 1) f32
    # Column store: 4*TB bytes of writeback per tile (128x less than a (TB,128)
    # broadcast slab).
    o_ref[0] = s.astype(o_ref.dtype)


# --------------------------------------------------------------------------- #
# One-time parameter preparation (do NOT call per forward step)
# --------------------------------------------------------------------------- #
def prepare_params(params, *, lane_multiple=128):
    """Cast + pad weights once.  Zero padding is value-safe: padded W1 columns
    produce gelu(0)=0 and meet zero-padded w2_row entries; padded x columns hit
    zero-padded W1 rows."""
    w1, b1, w2, b2 = params
    F, H = w1.shape
    L = w2.shape[1]
    assert L == 1, "VPU-reduce head assumes label_num == 1 (BaseModel.register_vars)"
    F_pad = _round_up(F, lane_multiple)
    H_pad = _round_up(H, lane_multiple)
    w1_p = jnp.pad(w1.astype(jnp.bfloat16), ((0, F_pad - F), (0, H_pad - H)))
    b1_p = jnp.pad(b1.reshape(1, H).astype(jnp.float32), ((0, 0), (0, H_pad - H)))
    w2_row = jnp.pad(w2[:, 0][None, :].astype(jnp.float32), ((0, 0), (0, H_pad - H)))
    b2_s = b2.reshape(1).astype(jnp.float32)
    return {"w1": w1_p, "b1": b1_p, "w2_row": w2_row, "b2": b2_s,
            "F": F, "F_pad": F_pad, "H_pad": H_pad, "L": L}


def _pick_batch_tile(B, batch_tile):
    if B >= 2 * batch_tile:
        return batch_tile                       # many tiles; megacore can split them
    if B >= 256:
        # >= 2 tiles so the "parallel" batch axis shards across v7x's 2 TCs and
        # fills 256-row MXU tiles on v6e/v7x.
        return _round_up(pl.cdiv(B, 2), 128)
    # Small batch: one tile.  x stays f32 in VMEM, so 8-row sublane granularity
    # is enough (no bf16 16-row packing concern for the activation block).
    return _round_up(max(B, 1), 8)


# --------------------------------------------------------------------------- #
# Forward wrapper
# --------------------------------------------------------------------------- #
def base_model_forward(x_nchw, prepared, *, batch_tile=256):
    """x_nchw: (B, C, H, W) float32 -> (B, label_num=1) float32."""
    B = x_nchw.shape[0]
    x_flat = x_nchw.reshape(B, -1)              # NCHW row-major flatten (glue)
    F, F_pad = prepared["F"], prepared["F_pad"]
    H_pad, L = prepared["H_pad"], prepared["L"]
    assert x_flat.shape[1] == F

    TB = _pick_batch_tile(B, batch_tile)
    B_pad = _round_up(B, TB)
    num_tiles = B_pad // TB

    # Activations stay f32 here; the bf16 cast happens inside the kernel.
    x_p = jnp.pad(x_flat, ((0, B_pad - B), (0, F_pad - F)))

    single = pl.Buffered(buffer_count=1)        # grid-invariant: no 2x VMEM cost

    out_tiles = pl.pallas_call(
        _mlp_head_kernel,
        out_shape=jax.ShapeDtypeStruct((num_tiles, TB, 1), jnp.float32),
        grid_spec=pltpu.PrefetchScalarGridSpec(
            num_scalar_prefetch=0,
            grid=(num_tiles,),                                           # batch tiles
            in_specs=[
                pl.BlockSpec((TB, F_pad), lambda i: (i, 0)),             # x tile (f32)
                pl.BlockSpec((F_pad, H_pad), lambda i: (0, 0),
                             pipeline_mode=single),                      # W1 (resident)
                pl.BlockSpec((1, H_pad), lambda i: (0, 0),
                             pipeline_mode=single),                      # b1
                pl.BlockSpec((1, H_pad), lambda i: (0, 0),
                             pipeline_mode=single),                      # w2 row
                pl.BlockSpec(memory_space=pltpu.MemorySpace.SMEM),       # b2 scalar
            ],
            out_specs=pl.BlockSpec((1, TB, 1), lambda i: (i, 0, 0)),
        ),
        compiler_params=pltpu.CompilerParams(
            # Batch axis is independent -> shardable across v7x's 2 TensorCores.
            dimension_semantics=("parallel",),
            # Explicit budget: resident (single-buffered) W1 + double-buffered x
            # tiles + the (TB, H_pad) f32 intermediate must fit; the default
            # scoped limit (16 MiB v5e / 32 MiB v6e,v7x) is too small at
            # intermediate_vec=2640 scale.  64 MiB == v7x physical per-TC VMEM.
            vmem_limit_bytes=64 * 1024 * 1024,
        ),
    )(x_p, prepared["w1"], prepared["b1"], prepared["w2_row"], prepared["b2"])

    # Rows [B:B_pad] hold garbage (gelu(b1).w2 + b2 of zero-padded inputs) and
    # are deliberately dropped here — never treat them as valid outputs.
    return out_tiles.reshape(B_pad, 1)[:B, :L]


def init_params(key, in_features, hidden, label_num):
    """Deterministic synthetic parameters (shapes implied by register_vars)."""
    k1, k2, k3, k4 = jax.random.split(key, 4)
    w1 = jax.random.normal(k1, (in_features, hidden), jnp.float32) * 0.02
    b1 = jax.random.normal(k2, (1, hidden), jnp.float32) * 0.01
    w2 = jax.random.normal(k3, (hidden, label_num), jnp.float32) * 0.02
    b2 = jax.random.normal(k4, (1, label_num), jnp.float32) * 0.01
    return (w1, b1, w2, b2)


if __name__ == "__main__":
    key = jax.random.PRNGKey(0)
    kx, kp = jax.random.split(key)

    # Small shapes consistent with the module: inChannels=2 (NCHW), batch=2.
    B, C, H, W = 2, 2, 16, 16
    hidden = 256          # scaled-down stand-in for intermediate_vec=2640
    label_num = 1         # from register_vars: self.label_num = 1

    x = jax.random.normal(kx, (B, C, H, W), jnp.float32)
    params = init_params(kp, C * H * W, hidden, label_num)

    prepared = prepare_params(params)          # one-time weight cast/pad
    out = base_model_forward(x, prepared)
    out = jax.block_until_ready(out)

    # Pure-JAX reference (same bf16-rounded matmul operands, same GELU variant).
    x_flat = x.reshape(B, -1)
    w1, b1, w2, b2 = params
    xb = x_flat.astype(jnp.bfloat16).astype(jnp.float32)
    w1b = w1.astype(jnp.bfloat16).astype(jnp.float32)
    h_ref = jax.nn.gelu(xb @ w1b + b1, approximate=True)
    ref = h_ref @ w2 + b2

    assert out.shape == (B, label_num)
    assert jnp.allclose(out, ref, atol=2e-3, rtol=2e-3)

    print("KERNEL_OK")
</pallas_src>

<mosaic_0001>
module attributes {stable_mosaic.version = 11 : i64} {
  func.func @_mlp_head_kernel(%arg0: i32, %arg1: memref<8x512xf32, #tpu.memory_space<vmem>>, %arg2: memref<512x256xbf16, #tpu.memory_space<vmem>>, %arg3: memref<1x256xf32, #tpu.memory_space<vmem>>, %arg4: memref<1x256xf32, #tpu.memory_space<vmem>>, %arg5: memref<1xf32, #tpu.memory_space<smem>>, %arg6: memref<1x8x1xf32, #tpu.memory_space<vmem>>) attributes {dimension_semantics = [#tpu.dimension_semantics<parallel>], iteration_bounds = array<i64: 1>, scalar_prefetch = 0 : i64, scratch_operands = 0 : i64, tpu.core_type = #tpu.core_type<tc>, window_params = [{transform_indices = @transform_0, window_bounds = array<i64: 8, 512>}, {pipeline_mode = #tpu.pipeline_mode<synchronous>, transform_indices = @transform_1, window_bounds = array<i64: 512, 256>}, {pipeline_mode = #tpu.pipeline_mode<synchronous>, transform_indices = @transform_2, window_bounds = array<i64: 1, 256>}, {pipeline_mode = #tpu.pipeline_mode<synchronous>, transform_indices = @transform_3, window_bounds = array<i64: 1, 256>}, {transform_indices = @transform_4, window_bounds = array<i64: 1>}, {transform_indices = @transform_5, window_bounds = array<i64: 1, 8, 1>}]} {
    %c0 = arith.constant 0 : index
    %c0_0 = arith.constant 0 : index
    %0 = vector.load %arg1[%c0, %c0_0] : memref<8x512xf32, #tpu.memory_space<vmem>>, vector<8x512xf32>
    %1 = arith.truncf %0 : vector<8x512xf32> to vector<8x512xbf16>
    %c0_1 = arith.constant 0 : index
    %c0_2 = arith.constant 0 : index
    %2 = vector.load %arg2[%c0_1, %c0_2] : memref<512x256xbf16, #tpu.memory_space<vmem>>, vector<512x256xbf16>
    %cst = arith.constant dense<0.000000e+00> : vector<8x256xf32>
    %3 = tpu.matmul %1, %2, %cst {dimension_numbers = #tpu.dot_dimension_numbers<[1], [0], [0], [1], [0, 0, 1, 1], [], []>} : vector<8x512xbf16>, vector<512x256xbf16>, vector<8x256xf32> -> vector<8x256xf32>
    %c0_3 = arith.constant 0 : index
    %c0_4 = arith.constant 0 : index
    %4 = vector.load %arg3[%c0_3, %c0_4] : memref<1x256xf32, #tpu.memory_space<vmem>>, vector<1x256xf32>
    %5 = vector.broadcast %4 : vector<1x256xf32> to vector<8x256xf32>
    %6 = arith.addf %3, %5 : vector<8x256xf32>
    %7 = arith.mulf %6, %6 : vector<8x256xf32>
    %8 = arith.mulf %6, %7 : vector<8x256xf32>
    %cst_5 = arith.constant 4.471500e-02 : f32
    %9 = vector.broadcast %cst_5 : f32 to vector<8x256xf32>
    %10 = arith.mulf %9, %8 : vector<8x256xf32>
    %11 = arith.addf %6, %10 : vector<8x256xf32>
    %cst_6 = arith.constant 0.797884583 : f32
    %12 = vector.broadcast %cst_6 : f32 to vector<8x256xf32>
    %13 = arith.mulf %12, %11 : vector<8x256xf32>
    %14 = math.tanh %13 : vector<8x256xf32>
    %cst_7 = arith.constant 1.000000e+00 : f32
    %15 = vector.broadcast %cst_7 : f32 to vector<8x256xf32>
    %16 = arith.addf %15, %14 : vector<8x256xf32>
    %cst_8 = arith.constant 5.000000e-01 : f32
    %17 = vector.broadcast %cst_8 : f32 to vector<8x256xf32>
    %18 = arith.mulf %17, %16 : vector<8x256xf32>
    %19 = arith.mulf %6, %18 : vector<8x256xf32>
    %c0_9 = arith.constant 0 : index
    %c0_10 = arith.constant 0 : index
    %20 = vector.load %arg4[%c0_9, %c0_10] : memref<1x256xf32, #tpu.memory_space<vmem>>, vector<1x256xf32>
    %21 = vector.broadcast %20 : vector<1x256xf32> to vector<8x256xf32>
    %22 = arith.mulf %19, %21 : vector<8x256xf32>
    %cst_11 = arith.constant dense<0.000000e+00> : vector<8xf32>
    %23 = vector.multi_reduction <add>, %22, %cst_11 [1] : vector<8x256xf32> to vector<8xf32>
    %24 = vector.shape_cast %23 : vector<8xf32> to vector<8x1xf32>
    %c0_12 = arith.constant 0 : index
    %25 = memref.load %arg5[%c0_12] : memref<1xf32, #tpu.memory_space<smem>>
    %26 = vector.broadcast %25 : f32 to vector<8x1xf32>
    %27 = arith.addf %24, %26 : vector<8x1xf32>
    %c0_13 = arith.constant 0 : index
    %c0_14 = arith.constant 0 : index
    %c0_15 = arith.constant 0 : index
    %28 = vector.load %arg6[%c0_13, %c0_14, %c0_15] : memref<1x8x1xf32, #tpu.memory_space<vmem>>, vector<1x8x1xf32>
    %29 = vector.shape_cast %28 : vector<1x8x1xf32> to vector<8x1xf32>
    %30 = vector.shape_cast %27 : vector<8x1xf32> to vector<1x8x1xf32>
    tpu.vector_store %arg6[%c0_13, %c0_14, %c0_15], %30 {strides = array<i32>} : memref<1x8x1xf32, #tpu.memory_space<vmem>>, vector<1x8x1xf32>,
    return
  }
  func.func @transform_0(%arg0: i32) -> (i32, i32) {
    %c0_i32 = arith.constant 0 : i32
    %c0_i32_0 = arith.constant 0 : i32
    return %arg0, %c0_i32 : i32, i32
  }
  func.func @transform_1(%arg0: i32) -> (i32, i32) {
    %c0_i32 = arith.constant 0 : i32
    %c0_i32_0 = arith.constant 0 : i32
    %c0_i32_1 = arith.constant 0 : i32
    return %c0_i32, %c0_i32_0 : i32, i32
  }
  func.func @transform_2(%arg0: i32) -> (i32, i32) {
    %c0_i32 = arith.constant 0 : i32
    %c0_i32_0 = arith.constant 0 : i32
    %c0_i32_1 = arith.constant 0 : i32
    return %c0_i32, %c0_i32_0 : i32, i32
  }
  func.func @transform_3(%arg0: i32) -> (i32, i32) {
    %c0_i32 = arith.constant 0 : i32
    %c0_i32_0 = arith.constant 0 : i32
    %c0_i32_1 = arith.constant 0 : i32
    return %c0_i32, %c0_i32_0 : i32, i32
  }
  func.func @transform_4(%arg0: i32) -> i32 {
    %c0_i32 = arith.constant 0 : i32
    %c0_i32_0 = arith.constant 0 : i32
    return %c0_i32 : i32
  }
  func.func @transform_5(%arg0: i32) -> (i32, i32, i32) {
    %c0_i32 = arith.constant 0 : i32
    %c0_i32_0 = arith.constant 0 : i32
    %c0_i32_1 = arith.constant 0 : i32
    return %arg0, %c0_i32, %c0_i32_0 : i32, i32, i32
  }
}

</mosaic_0001>

<llo_original>
// kernel: tpu_custom_call.1
$region0: #{tpu_custom_call.1}
  #allocation0 [shape = 'u32[]', space=smem, size = 0x4, offset = 0x4, fixed_abs, tag = 'smem constant byte address 0x4 - core index']
  #allocation1 [shape = 'u32[144,128]{1,0:T(1,128)}', space=vmem, size = 0x12000, scoped, tag = 'internal scratch']
  #allocation2 [shape = 'f32[1]{0:T(128)S(6)}', space=smem, size = 0x200, scoped, tag = 'scoped memory for tpu_custom_call.1']
  %s0 = inlined_call_operand.hbm [shape: f32[8,512], index: 0, kind: input, shape index: {}]
  %s1 = inlined_call_operand.hbm [shape: bf16[512,256], index: 1, kind: input, shape index: {}]
  %s2 = inlined_call_operand.hbm [shape: f32[1,256], index: 2, kind: input, shape index: {}]
  %s3 = inlined_call_operand.hbm [shape: f32[1,256], index: 3, kind: input, shape index: {}]
  %s4 = inlined_call_operand.<no memory space> [shape: f32[1], index: 4, kind: input, shape index: {}]
  %s5 = inlined_call_operand.hbm [shape: f32[1,8,1], index: 5, kind: output, shape index: {}]
  %s6 = sld [smem:[#allocation0]]
  $region46: #{tpu_custom_call.1} parent=0
    _
  %s8 = ssub.s32 1, %s6
  %s9 = scalar_select 0, %s8, %s6
  %10 = sst [smem:[#allocation2]] %s4
  $region1: #{tpu_custom_call.1} parent=0
    #allocation3 [shape = 'u8[16384]{0}', space=vmem, size = 0x4000, scoped, tag = 'input window, operand 0, single buffered']
    #allocation4 [shape = 's32[1]{0}', space=sflag, size = 0x4, scoped, tag = 'scoped memory for tpu_custom_call.1']
    #allocation5 [shape = 's32[1]{0}', space=sflag, size = 0x4, scoped, tag = 'scoped memory for tpu_custom_call.1']
    #allocation6 [shape = 'u8[262144]{0}', space=vmem, size = 0x40000, scoped, tag = 'input window, operand 1, single buffered']
    #allocation7 [shape = 's32[1]{0}', space=sflag, size = 0x4, scoped, tag = 'scoped memory for tpu_custom_call.1']
    #allocation8 [shape = 'u8[1024]{0}', space=vmem, size = 0x400, scoped, tag = 'input window, operand 2, single buffered']
    #allocation9 [shape = 'u8[1024]{0}', space=vmem, size = 0x400, scoped, tag = 'input window, operand 3, single buffered']
    #allocation10 [shape = 's32[1]{0}', space=sflag, size = 0x4, scoped, tag = 'scoped memory for tpu_custom_call.1']
    #allocation11 [shape = 'u8[4096]{0}', space=vmem, size = 0x1000, scoped, tag = 'output window, operand 0, single buffered']
    %11 = vsyncpa [#allocation4], 0
    %12 = vsyncpa [#allocation7], 0
    %13 = vsyncpa [#allocation10], 0
    %14 = vsyncpa [#allocation5], 0
    // Predicated region
    $region2: #{tpu_custom_call.1} parent=1 // pred_check
      _
    $region3: #{tpu_custom_call.1} parent=1 // pred_check_branch
      %16 = sbr.rel (0) target = $region5
    $region4: #{tpu_custom_call.1} parent=1 // pred_region
      %s18 = ssub.s32 512, 512
      %19 = vsyncadd [#allocation4], %s18
      %s21 = sshll.u32 [#allocation3], 4
      %s22 = int_to_ptr.vmem [resolvable:$true] %s21
      %24 = dma.hbm_to_vmem [thread:$0]  %s0, 512, %s22, [#allocation4]
    $region5: #{tpu_custom_call.1} parent=1 // pred_fallthru
      _
    // Predicated region
    $region6: #{tpu_custom_call.1} parent=1 // pred_check
      _
    $region7: #{tpu_custom_call.1} parent=1 // pred_check_branch
      %26 = sbr.rel (0) target = $region9
    $region8: #{tpu_custom_call.1} parent=1 // pred_region
      %s28 = ssub.s32 8192, 8192
      %29 = vsyncadd [#allocation7], %s28
      %s30 = sshll.u32 [#allocation6], 4
      %s31 = int_to_ptr.vmem [resolvable:$true] %s30
      %36 = dma.hbm_to_vmem [thread:$0]  %s1, 8192, %s31, [#allocation7], 128, 128, 8
    $region9: #{tpu_custom_call.1} parent=1 // pred_fallthru
      _
    // Predicated region
    $region10: #{tpu_custom_call.1} parent=1 // pred_check
      _
    $region11: #{tpu_custom_call.1} parent=1 // pred_check_branch
      %38 = sbr.rel (0) target = $region13
    $region12: #{tpu_custom_call.1} parent=1 // pred_region
      %s40 = ssub.s32 32, 32
      %41 = vsyncadd [#allocation7], %s40
      %s43 = sshll.u32 [#allocation8], 4
      %s44 = int_to_ptr.vmem [resolvable:$true] %s43
      %46 = dma.hbm_to_vmem [thread:$0]  %s2, 32, %s44, [#allocation7]
    $region13: #{tpu_custom_call.1} parent=1 // pred_fallthru
      _
    // Predicated region
    $region14: #{tpu_custom_call.1} parent=1 // pred_check
      _
    $region15: #{tpu_custom_call.1} parent=1 // pred_check_branch
      %48 = sbr.rel (0) target = $region17
    $region16: #{tpu_custom_call.1} parent=1 // pred_region
      %s50 = ssub.s32 32, 32
      %51 = vsyncadd [#allocation10], %s50
      %s53 = sshll.u32 [#allocation9], 4
      %s54 = int_to_ptr.vmem [resolvable:$true] %s53
      %56 = dma.hbm_to_vmem [thread:$0]  %s3, 32, %s54, [#allocation10]
    $region17: #{tpu_custom_call.1} parent=1 // pred_fallthru
      _
    // Predicated region
    $region18: #{tpu_custom_call.1} parent=1 // pred_check
      _
    $region19: #{tpu_custom_call.1} parent=1 // pred_check_branch
      %58 = sbr.rel (0) target = $region21
    $region20: #{tpu_custom_call.1} parent=1 // pred_region
      _
    $region21: #{tpu_custom_call.1} parent=1 // pred_fallthru
      _
    // Predicated region
    $region22: #{tpu_custom_call.1} parent=1 // pred_check
      _
    $region23: #{tpu_custom_call.1} parent=1 // pred_check_branch
      %60 = sbr.rel (0) target = $region25
    $region24: #{tpu_custom_call.1} parent=1 // pred_region
      %61 = dma.done [#allocation4], 512
    $region25: #{tpu_custom_call.1} parent=1 // pred_fallthru
      _
    // Predicated region
    $region26: #{tpu_custom_call.1} parent=1 // pred_check
      _
    $region27: #{tpu_custom_call.1} parent=1 // pred_check_branch
      %63 = sbr.rel (0) target = $region29
    $region28: #{tpu_custom_call.1} parent=1 // pred_region
      %64 = dma.done [#allocation7], 8192
    $region29: #{tpu_custom_call.1} parent=1 // pred_fallthru
      _
    // Predicated region
    $region30: #{tpu_custom_call.1} parent=1 // pred_check
      _
    $region31: #{tpu_custom_call.1} parent=1 // pred_check_branch
      %66 = sbr.rel (0) target = $region33
    $region32: #{tpu_custom_call.1} parent=1 // pred_region
      %67 = dma.done [#allocation7], 32
    $region33: #{tpu_custom_call.1} parent=1 // pred_fallthru
      _
    // Predicated region
    $region34: #{tpu_custom_call.1} parent=1 // pred_check
      _
    $region35: #{tpu_custom_call.1} parent=1 // pred_check_branch
      %69 = sbr.rel (0) target = $region37
    $region36: #{tpu_custom_call.1} parent=1 // pred_region
      %70 = dma.done [#allocation10], 32
    $region37: #{tpu_custom_call.1} parent=1 // pred_fallthru
      _
    %v71 = vld [vmem:[#allocation3] sm:$0xff]
    %v72 = vld [vmem:[#allocation3 + $0x8] sm:$0xff]
    %v73 = vld [vmem:[#allocation3 + $0x10] sm:$0xff]
    %v74 = vld [vmem:[#allocation3 + $0x18] sm:$0xff]
    %v75 = vpack.c.bf16 %v71, %v71
    %v76 = vpack.c.bf16 %v72, %v72
    %v77 = vpack.c.bf16 %v73, %v73
    %v78 = vpack.c.bf16 %v74, %v74
    %v79 = vld [vmem:[#allocation6] sm:$0xff]
    %v80 = vld [vmem:[#allocation6 + $0x8] sm:$0xff]
    %v81 = vld [vmem:[#allocation6 + $0x10] sm:$0xff]
    %v82 = vld [vmem:[#allocation6 + $0x18] sm:$0xff]
    %v83 = vld [vmem:[#allocation6 + $0x20] sm:$0xff]
    %v84 = vld [vmem:[#allocation6 + $0x28] sm:$0xff]
    %v85 = vld [vmem:[#allocation6 + $0x30] sm:$0xff]
    %v86 = vld [vmem:[#allocation6 + $0x38] sm:$0xff]
    %v87 = vld [vmem:[#allocation6 + $0x40] sm:$0xff]
    %v88 = vld [vmem:[#allocation6 + $0x48] sm:$0xff]
    %v89 = vld [vmem:[#allocation6 + $0x50] sm:$0xff]
    %v90 = vld [vmem:[#allocation6 + $0x58] sm:$0xff]
    %v91 = vld [vmem:[#allocation6 + $0x60] sm:$0xff]
    %v92 = vld [vmem:[#allocation6 + $0x68] sm:$0xff]
    %v93 = vld [vmem:[#allocation6 + $0x70] sm:$0xff]
    %v94 = vld [vmem:[#allocation6 + $0x78] sm:$0xff]
    %v95 = vld [vmem:[#allocation6 + $0x80] sm:$0xff]
    %v96 = vld [vmem:[#allocation6 + $0x88] sm:$0xff]
    %v97 = vld [vmem:[#allocation6 + $0x90] sm:$0xff]
    %v98 = vld [vmem:[#allocation6 + $0x98] sm:$0xff]
    %v99 = vld [vmem:[#allocation6 + $0xa0] sm:$0xff]
    %v100 = vld [vmem:[#allocation6 + $0xa8] sm:$0xff]
    %v101 = vld [vmem:[#allocation6 + $0xb0] sm:$0xff]
    %v102 = vld [vmem:[#allocation6 + $0xb8] sm:$0xff]
    %v103 = vld [vmem:[#allocation6 + $0xc0] sm:$0xff]
    %v104 = vld [vmem:[#allocation6 + $0xc8] sm:$0xff]
    %v105 = vld [vmem:[#allocation6 + $0xd0] sm:$0xff]
    %v106 = vld [vmem:[#allocation6 + $0xd8] sm:$0xff]
    %v107 = vld [vmem:[#allocation6 + $0xe0] sm:$0xff]
    %v108 = vld [vmem:[#allocation6 + $0xe8] sm:$0xff]
    %v109 = vld [vmem:[#allocation6 + $0xf0] sm:$0xff]
    %v110 = vld [vmem:[#allocation6 + $0xf8] sm:$0xff]
    %v111 = vld [vmem:[#allocation6 + $0x100] sm:$0xff]
    %v112 = vld [vmem:[#allocation6 + $0x108] sm:$0xff]
    %v113 = vld [vmem:[#allocation6 + $0x110] sm:$0xff]
    %v114 = vld [vmem:[#allocation6 + $0x118] sm:$0xff]
    %v115 = vld [vmem:[#allocation6 + $0x120] sm:$0xff]
    %v116 = vld [vmem:[#allocation6 + $0x128] sm:$0xff]
    %v117 = vld [vmem:[#allocation6 + $0x130] sm:$0xff]
    %v118 = vld [vmem:[#allocation6 + $0x138] sm:$0xff]
    %v119 = vld [vmem:[#allocation6 + $0x140] sm:$0xff]
    %v120 = vld [vmem:[#allocation6 + $0x148] sm:$0xff]
    %v121 = vld [vmem:[#allocation6 + $0x150] sm:$0xff]
    %v122 = vld [vmem:[#allocation6 + $0x158] sm:$0xff]
    %v123 = vld [vmem:[#allocation6 + $0x160] sm:$0xff]
    %v124 = vld [vmem:[#allocation6 + $0x168] sm:$0xff]
    %v125 = vld [vmem:[#allocation6 + $0x170] sm:$0xff]
    %v126 = vld [vmem:[#allocation6 + $0x178] sm:$0xff]
    %v127 = vld [vmem:[#allocation6 + $0x180] sm:$0xff]
    %v128 = vld [vmem:[#allocation6 + $0x188] sm:$0xff]
    %v129 = vld [vmem:[#allocation6 + $0x190] sm:$0xff]
    %v130 = vld [vmem:[#allocation6 + $0x198] sm:$0xff]
    %v131 = vld [vmem:[#allocation6 + $0x1a0] sm:$0xff]
    %v132 = vld [vmem:[#allocation6 + $0x1a8] sm:$0xff]
    %v133 = vld [vmem:[#allocation6 + $0x1b0] sm:$0xff]
    %v134 = vld [vmem:[#allocation6 + $0x1b8] sm:$0xff]
    %v135 = vld [vmem:[#allocation6 + $0x1c0] sm:$0xff]
    %v136 = vld [vmem:[#allocation6 + $0x1c8] sm:$0xff]
    %v137 = vld [vmem:[#allocation6 + $0x1d0] sm:$0xff]
    %v138 = vld [vmem:[#allocation6 + $0x1d8] sm:$0xff]
    %v139 = vld [vmem:[#allocation6 + $0x1e0] sm:$0xff]
    %v140 = vld [vmem:[#allocation6 + $0x1e8] sm:$0xff]
    %v141 = vld [vmem:[#allocation6 + $0x1f0] sm:$0xff]
    %v142 = vld [vmem:[#allocation6 + $0x1f8] sm:$0xff]
    %v143 = vld [vmem:[#allocation8] sm:$0x3]
    %v145 = vlaneseq
    %v146 = vshrl.u32 %v145, 7
    %v147 = vsub.s32 0, %v146
    %v148 = vrot.slane %v143, %v147
    %v149 = vlaneseq
    %v150 = vshrl.u32 %v149, 7
    %v151 = vsub.s32 1, %v150
    %v152 = vrot.slane %v143, %v151
    %v219 = vunpack.c.l.b16 %v79
    %v220 = vunpack.c.h.b16 %v79
    %v221 = vunpack.c.l.b16 %v80
    %v222 = vunpack.c.h.b16 %v80
    %v223 = vunpack.c.l.b16 %v81
    %v224 = vunpack.c.h.b16 %v81
    %v225 = vunpack.c.l.b16 %v82
    %v226 = vunpack.c.h.b16 %v82
    %v227 = vunpack.c.l.b16 %v83
    %v228 = vunpack.c.h.b16 %v83
    %v229 = vunpack.c.l.b16 %v84
    %v230 = vunpack.c.h.b16 %v84
    %v231 = vunpack.c.l.b16 %v85
    %v232 = vunpack.c.h.b16 %v85
    %v233 = vunpack.c.l.b16 %v86
    %v234 = vunpack.c.h.b16 %v86
    %v235 = vunpack.c.l.b16 %v87
    %v236 = vunpack.c.h.b16 %v87
    %v237 = vunpack.c.l.b16 %v88
    %v238 = vunpack.c.h.b16 %v88
    %v239 = vunpack.c.l.b16 %v89
    %v240 = vunpack.c.h.b16 %v89
    %v241 = vunpack.c.l.b16 %v90
    %v242 = vunpack.c.h.b16 %v90
    %v243 = vunpack.c.l.b16 %v91
    %v244 = vunpack.c.h.b16 %v91
    %v245 = vunpack.c.l.b16 %v92
    %v246 = vunpack.c.h.b16 %v92
    %v247 = vunpack.c.l.b16 %v93
    %v248 = vunpack.c.h.b16 %v93
    %v249 = vunpack.c.l.b16 %v94
    %v250 = vunpack.c.h.b16 %v94
    %v251 = vunpack.c.l.b16 %v95
    %v252 = vunpack.c.h.b16 %v95
    %v253 = vunpack.c.l.b16 %v96
    %v254 = vunpack.c.h.b16 %v96
    %v255 = vunpack.c.l.b16 %v97
    %v256 = vunpack.c.h.b16 %v97
    %v257 = vunpack.c.l.b16 %v98
    %v258 = vunpack.c.h.b16 %v98
    %v259 = vunpack.c.l.b16 %v99
    %v260 = vunpack.c.h.b16 %v99
    %v261 = vunpack.c.l.b16 %v100
    %v262 = vunpack.c.h.b16 %v100
    %v263 = vunpack.c.l.b16 %v101
    %v264 = vunpack.c.h.b16 %v101
    %v265 = vunpack.c.l.b16 %v102
    %v266 = vunpack.c.h.b16 %v102
    %v267 = vunpack.c.l.b16 %v103
    %v268 = vunpack.c.h.b16 %v103
    %v269 = vunpack.c.l.b16 %v104
    %v270 = vunpack.c.h.b16 %v104
    %v271 = vunpack.c.l.b16 %v105
    %v272 = vunpack.c.h.b16 %v105
    %v273 = vunpack.c.l.b16 %v106
    %v274 = vunpack.c.h.b16 %v106
    %v275 = vunpack.c.l.b16 %v107
    %v276 = vunpack.c.h.b16 %v107
    %v277 = vunpack.c.l.b16 %v108
    %v278 = vunpack.c.h.b16 %v108
    %v279 = vunpack.c.l.b16 %v109
    %v280 = vunpack.c.h.b16 %v109
    %v281 = vunpack.c.l.b16 %v110
    %v282 = vunpack.c.h.b16 %v110
    %v283 = vunpack.c.l.b16 %v111
    %v284 = vunpack.c.h.b16 %v111
    %v285 = vunpack.c.l.b16 %v112
    %v286 = vunpack.c.h.b16 %v112
    %v287 = vunpack.c.l.b16 %v113
    %v288 = vunpack.c.h.b16 %v113
    %v289 = vunpack.c.l.b16 %v114
    %v290 = vunpack.c.h.b16 %v114
    %v291 = vunpack.c.l.b16 %v115
    %v292 = vunpack.c.h.b16 %v115
    %v293 = vunpack.c.l.b16 %v116
    %v294 = vunpack.c.h.b16 %v116
    %v295 = vunpack.c.l.b16 %v117
    %v296 = vunpack.c.h.b16 %v117
    %v297 = vunpack.c.l.b16 %v118
    %v298 = vunpack.c.h.b16 %v118
    %v299 = vunpack.c.l.b16 %v119
    %v300 = vunpack.c.h.b16 %v119
    %v301 = vunpack.c.l.b16 %v120
    %v302 = vunpack.c.h.b16 %v120
    %v303 = vunpack.c.l.b16 %v121
    %v304 = vunpack.c.h.b16 %v121
    %v305 = vunpack.c.l.b16 %v122
    %v306 = vunpack.c.h.b16 %v122
    %v307 = vunpack.c.l.b16 %v123
    %v308 = vunpack.c.h.b16 %v123
    %v309 = vunpack.c.l.b16 %v124
    %v310 = vunpack.c.h.b16 %v124
    %v311 = vunpack.c.l.b16 %v125
    %v312 = vunpack.c.h.b16 %v125
    %v313 = vunpack.c.l.b16 %v126
    %v314 = vunpack.c.h.b16 %v126
    %v315 = vunpack.c.l.b16 %v127
    %v316 = vunpack.c.h.b16 %v127
    %v317 = vunpack.c.l.b16 %v128
    %v318 = vunpack.c.h.b16 %v128
    %v319 = vunpack.c.l.b16 %v129
    %v320 = vunpack.c.h.b16 %v129
    %v321 = vunpack.c.l.b16 %v130
    %v322 = vunpack.c.h.b16 %v130
    %v323 = vunpack.c.l.b16 %v131
    %v324 = vunpack.c.h.b16 %v131
    %v325 = vunpack.c.l.b16 %v132
    %v326 = vunpack.c.h.b16 %v132
    %v327 = vunpack.c.l.b16 %v133
    %v328 = vunpack.c.h.b16 %v133
    %v329 = vunpack.c.l.b16 %v134
    %v330 = vunpack.c.h.b16 %v134
    %v331 = vunpack.c.l.b16 %v135
    %v332 = vunpack.c.h.b16 %v135
    %v333 = vunpack.c.l.b16 %v136
    %v334 = vunpack.c.h.b16 %v136
    %v335 = vunpack.c.l.b16 %v137
    %v336 = vunpack.c.h.b16 %v137
    %v337 = vunpack.c.l.b16 %v138
    %v338 = vunpack.c.h.b16 %v138
    %v339 = vunpack.c.l.b16 %v139
    %v340 = vunpack.c.h.b16 %v139
    %v341 = vunpack.c.l.b16 %v140
    %v342 = vunpack.c.h.b16 %v140
    %v343 = vunpack.c.l.b16 %v141
    %v344 = vunpack.c.h.b16 %v141
    %v345 = vunpack.c.l.b16 %v142
    %v346 = vunpack.c.h.b16 %v142
    %v347 = vpack.c.b16 %v221, %v219
    %v348 = vpack.c.b16 %v222, %v220
    %v349 = vpack.c.b16 %v225, %v223
    %v350 = vpack.c.b16 %v226, %v224
    %v351 = vpack.c.b16 %v229, %v227
    %v352 = vpack.c.b16 %v230, %v228
    %v353 = vpack.c.b16 %v233, %v231
    %v354 = vpack.c.b16 %v234, %v232
    %v355 = vpack.c.b16 %v237, %v235
    %v356 = vpack.c.b16 %v238, %v236
    %v357 = vpack.c.b16 %v241, %v239
    %v358 = vpack.c.b16 %v242, %v240
    %v359 = vpack.c.b16 %v245, %v243
    %v360 = vpack.c.b16 %v246, %v244
    %v361 = vpack.c.b16 %v249, %v247
    %v362 = vpack.c.b16 %v250, %v248
    %v363 = vpack.c.b16 %v253, %v251
    %v364 = vpack.c.b16 %v254, %v252
    %v365 = vpack.c.b16 %v257, %v255
    %v366 = vpack.c.b16 %v258, %v256
    %v367 = vpack.c.b16 %v261, %v259
    %v368 = vpack.c.b16 %v262, %v260
    %v369 = vpack.c.b16 %v265, %v263
    %v370 = vpack.c.b16 %v266, %v264
    %v371 = vpack.c.b16 %v269, %v267
    %v372 = vpack.c.b16 %v270, %v268
    %v373 = vpack.c.b16 %v273, %v271
    %v374 = vpack.c.b16 %v274, %v272
    %v375 = vpack.c.b16 %v277, %v275
    %v376 = vpack.c.b16 %v278, %v276
    %v377 = vpack.c.b16 %v281, %v279
    %v378 = vpack.c.b16 %v282, %v280
    %v379 = vpack.c.b16 %v285, %v283
    %v380 = vpack.c.b16 %v286, %v284
    %v381 = vpack.c.b16 %v289, %v287
    %v382 = vpack.c.b16 %v290, %v288
    %v383 = vpack.c.b16 %v293, %v291
    %v384 = vpack.c.b16 %v294, %v292
    %v385 = vpack.c.b16 %v297, %v295
    %v386 = vpack.c.b16 %v298, %v296
    %v387 = vpack.c.b16 %v301, %v299
    %v388 = vpack.c.b16 %v302, %v300
    %v389 = vpack.c.b16 %v305, %v303
    %v390 = vpack.c.b16 %v306, %v304
    %v391 = vpack.c.b16 %v309, %v307
    %v392 = vpack.c.b16 %v310, %v308
    %v393 = vpack.c.b16 %v313, %v311
    %v394 = vpack.c.b16 %v314, %v312
    %v395 = vpack.c.b16 %v317, %v315
    %v396 = vpack.c.b16 %v318, %v316
    %v397 = vpack.c.b16 %v321, %v319
    %v398 = vpack.c.b16 %v322, %v320
    %v399 = vpack.c.b16 %v325, %v323
    %v400 = vpack.c.b16 %v326, %v324
    %v401 = vpack.c.b16 %v329, %v327
    %v402 = vpack.c.b16 %v330, %v328
    %v403 = vpack.c.b16 %v333, %v331
    %v404 = vpack.c.b16 %v334, %v332
    %v405 = vpack.c.b16 %v337, %v335
    %v406 = vpack.c.b16 %v338, %v336
    %v407 = vpack.c.b16 %v341, %v339
    %v408 = vpack.c.b16 %v342, %v340
    %v409 = vpack.c.b16 %v345, %v343
    %v410 = vpack.c.b16 %v346, %v344
    %475 = vmatprep.subr.bf16.mxu0 %v348
    %476 = vmatpush1.bf16.msra.mxu0 %v347
    %477 = vmatprep.subr.bf16.mxu0 %v350
    %478 = vmatpush1.bf16.msra.mxu0 %v349
    %479 = vmatprep.subr.bf16.mxu0 %v352
    %480 = vmatpush1.bf16.msra.mxu0 %v351
    %481 = vmatprep.subr.bf16.mxu0 %v354
    %482 = vmatpush1.bf16.msra.mxu0 %v353
    %483 = vmatprep.subr.bf16.mxu0 %v356
    %484 = vmatpush1.bf16.msra.mxu0 %v355
    %485 = vmatprep.subr.bf16.mxu0 %v358
    %486 = vmatpush1.bf16.msra.mxu0 %v357
    %487 = vmatprep.subr.bf16.mxu0 %v360
    %488 = vmatpush1.bf16.msra.mxu0 %v359
    %489 = vmatprep.subr.bf16.mxu0 %v362
    %490 = vmatpush1.bf16.msra.mxu0 %v361
    %491 = vmatprep.subr.bf16.mxu0 %v364
    %492 = vmatpush1.bf16.msra.mxu0 %v363
    %493 = vmatprep.subr.bf16.mxu0 %v366
    %494 = vmatpush1.bf16.msra.mxu0 %v365
    %495 = vmatprep.subr.bf16.mxu0 %v368
    %496 = vmatpush1.bf16.msra.mxu0 %v367
    %497 = vmatprep.subr.bf16.mxu0 %v370
    %498 = vmatpush1.bf16.msra.mxu0 %v369
    %499 = vmatprep.subr.bf16.mxu0 %v372
    %500 = vmatpush1.bf16.msra.mxu0 %v371
    %501 = vmatprep.subr.bf16.mxu0 %v374
    %502 = vmatpush1.bf16.msra.mxu0 %v373
    %503 = vmatprep.subr.bf16.mxu0 %v376
    %504 = vmatpush1.bf16.msra.mxu0 %v375
    %505 = vmatprep.subr.bf16.mxu0 %v378
    %506 = vmatpush1.bf16.msra.mxu0 %v377
    %507 = vmatprep.mubr.bf16.mxu0 %v76
    %508 = vmatmul.mubr.bf16.gmra.mrb[0].mxu0 %v75
    %v509 = vpop.f32.mrb[0].mxu0
    %v510 = vadd.f32 %v148, %v509
    %v511 = vpop.f32.mrb[0].mxu0
    %v512 = vadd.f32 %v152, %v511
    %v513 = vpop.f32.mrb[0].mxu0
    %v514 = vpop.f32.mrb[0].mxu0
    %515 = vdwg.mxu0
    %516 = vmatprep.subr.bf16.mxu0 %v380
    %517 = vmatpush1.bf16.msra.mxu0 %v379
    %518 = vmatprep.subr.bf16.mxu0 %v382
    %519 = vmatpush1.bf16.msra.mxu0 %v381
    %520 = vmatprep.subr.bf16.mxu0 %v384
    %521 = vmatpush1.bf16.msra.mxu0 %v383
    %522 = vmatprep.subr.bf16.mxu0 %v386
    %523 = vmatpush1.bf16.msra.mxu0 %v385
    %524 = vmatprep.subr.bf16.mxu0 %v388
    %525 = vmatpush1.bf16.msra.mxu0 %v387
    %526 = vmatprep.subr.bf16.mxu0 %v390
    %527 = vmatpush1.bf16.msra.mxu0 %v389
    %528 = vmatprep.subr.bf16.mxu0 %v392
    %529 = vmatpush1.bf16.msra.mxu0 %v391
    %530 = vmatprep.subr.bf16.mxu0 %v394
    %531 = vmatpush1.bf16.msra.mxu0 %v393
    %532 = vmatprep.subr.bf16.mxu0 %v396
    %533 = vmatpush1.bf16.msra.mxu0 %v395
    %534 = vmatprep.subr.bf16.mxu0 %v398
    %535 = vmatpush1.bf16.msra.mxu0 %v397
    %536 = vmatprep.subr.bf16.mxu0 %v400
    %537 = vmatpush1.bf16.msra.mxu0 %v399
    %538 = vmatprep.subr.bf16.mxu0 %v402
    %539 = vmatpush1.bf16.msra.mxu0 %v401
    %540 = vmatprep.subr.bf16.mxu0 %v404
    %541 = vmatpush1.bf16.msra.mxu0 %v403
    %542 = vmatprep.subr.bf16.mxu0 %v406
    %543 = vmatpush1.bf16.msra.mxu0 %v405
    %544 = vmatprep.subr.bf16.mxu0 %v408
    %545 = vmatpush1.bf16.msra.mxu0 %v407
    %546 = vmatprep.subr.bf16.mxu0 %v410
    %547 = vmatpush1.bf16.msra.mxu0 %v409
    %548 = vmatprep.mubr.bf16.mxu0 %v78
    %549 = vmatmul.mubr.bf16.gmra.mrb[0].mxu0 %v77
    %v550 = vpop.f32.mrb[0].mxu0
    %v551 = vadd.f32 %v510, %v550
    %v552 = vpop.f32.mrb[0].mxu0
    %v553 = vadd.f32 %v512, %v552
    %v554 = vpop.f32.mrb[0].mxu0
    %v555 = vpop.f32.mrb[0].mxu0
    %556 = vdwg.mxu0
    %v557 = vmul.f32 %v551, %v551
    %v558 = vmul.f32 %v553, %v553
    %v559 = vmul.f32 %v551, %v557
    %v560 = vmul.f32 %v553, %v558
    %v561 = vmul.f32 %v559, 0.044715
    %v562 = vmul.f32 %v560, 0.044715
    %v563 = vadd.f32 %v551, %v561
    %v564 = vadd.f32 %v553, %v562
    %v565 = vmul.f32 %v563, 0.7978846
    %v566 = vmul.f32 %v564, 0.7978846
    %v567 = vtanh.pop %v565
    %v568 = vtanh.pop %v566
    %v569 = vadd.f32 %v567, 1.0
    %v570 = vadd.f32 %v568, 1.0
    %v571 = vmul.f32 %v569, 0.5
    %v572 = vmul.f32 %v570, 0.5
    %v573 = vmul.f32 %v551, %v571
    %v574 = vmul.f32 %v553, %v572
    %v575 = vld [vmem:[#allocation9] sm:$0x3]
    %v577 = vlaneseq
    %v578 = vshrl.u32 %v577, 7
    %v579 = vsub.s32 0, %v578
    %v580 = vrot.slane %v575, %v579
    %v581 = vlaneseq
    %v582 = vshrl.u32 %v581, 7
    %v583 = vsub.s32 1, %v582
    %v584 = vrot.slane %v575, %v583
    %v587 = vmul.f32 %v573, %v580
    %v588 = vmul.f32 %v574, %v584
    %v589 = vadd.f32 %v587, %v588
    %590 = vadd.xlane.f32.xlu0 %v589
    %v591 = vpop.xlane.xlu0 %590
    %s592 = sld [smem:[#allocation2]]
    %v593 = vstv %s592
    %v594 = vadd.f32 %v591, %v593
    %vm595 = vcmask 7168
    %596 = vst.msk [vmem:[#allocation11] sm:$0xff] %vm595, %v594
    // Predicated region
    $region38: #{tpu_custom_call.1} parent=1 // pred_check
      _
    $region39: #{tpu_custom_call.1} parent=1 // pred_check_branch
      %598 = sbr.rel (0) target = $region41
    $region40: #{tpu_custom_call.1} parent=1 // pred_region
      %s600 = ssub.s32 128, 128
      %601 = vsyncadd [#allocation5], %s600
      %s603 = sshll.u32 [#allocation11], 4
      %s604 = int_to_ptr.vmem [resolvable:$true] %s603
      %606 = dma.vmem_to_hbm [thread:$0]  %s604, 128, %s5, [#allocation5]
    $region41: #{tpu_custom_call.1} parent=1 // pred_fallthru
      _
    // Predicated region
    $region42: #{tpu_custom_call.1} parent=1 // pred_check
      _
    $region43: #{tpu_custom_call.1} parent=1 // pred_check_branch
      %608 = sbr.rel (0) target = $region45
    $region44: #{tpu_custom_call.1} parent=1 // pred_region
      %609 = dma.done [#allocation5], 128
    $region45: #{tpu_custom_call.1} parent=1 // pred_fallthru
      _
    %610 = vsyncpa [#allocation4], 1
    %611 = vsyncpa [#allocation7], 1
    %612 = vsyncpa [#allocation10], 1
    %613 = vsyncpa [#allocation5], 1

</llo_original>
